<compile_context>
chip_gen: v7x
topology: tpu7x:2x2x1
jax: 0.10.0
libtpu: 0.0.40
codegen_flags: <defaults>
</compile_context>

<pallas_src>
import functools

import jax
import jax.numpy as jnp
from jax import lax
from jax.experimental import pallas as pl
from jax.experimental.pallas import tpu as pltpu


def _maxpool_kernel(x_ref, o_ref, *, kk):
    # x_ref: (kk, TH, Wout, T_NC)  -- kk = k*k shifted window views
    # o_ref: (TH, Wout, T_NC)
    acc = x_ref[0]
    for i in range(1, kk):
        acc = jnp.maximum(acc, x_ref[i])  # VPU-only elementwise max tree
    o_ref[...] = acc


def maxpool2d(x, k=3, *, target_block_bytes=4 * 1024 * 1024):
    """Equivalent of torch.nn.MaxPool2d(k) (stride=k, no padding, floor mode) on NCHW."""
    n, c, h, w = x.shape
    assert h >= k and w >= k, "spatial dims must be >= kernel size"
    hout, wout = h // k, w // k
    nc = n * c
    kk = k * k

    # --- layout plumbing (XLA, outside the kernel) --------------------------
    # Crop to full windows (PyTorch floor mode), then rearrange
    #   (N, C, Hout*k, Wout*k) -> (k*k, Hout, Wout, N*C)
    xc = x[:, :, :hout * k, :wout * k]
    xr = xc.reshape(n, c, hout, k, wout, k)
    xr = jnp.transpose(xr, (3, 5, 2, 4, 0, 1)).reshape(kk, hout, wout, nc)

    # Pad channels up to a multiple of 128 lanes -> unmasked lane-dense stores.
    ncp = ((nc + 127) // 128) * 128
    if ncp != nc:
        xr = jnp.pad(xr, ((0, 0), (0, 0), (0, 0), (0, ncp - nc)))

    itemsize = jnp.dtype(x.dtype).itemsize

    # --- tiling: pipelined grid over (Hout, N*C) -----------------------------
    tile_nc = min(ncp, 512)                           # multiple of 128
    row_bytes = kk * wout * tile_nc * itemsize        # one Hout-row of an input block
    tile_h = max(1, min(hout, target_block_bytes // max(row_bytes, 1)))

    grid = (pl.cdiv(hout, tile_h), pl.cdiv(ncp, tile_nc))

    out = pl.pallas_call(
        functools.partial(_maxpool_kernel, kk=kk),
        out_shape=jax.ShapeDtypeStruct((hout, wout, ncp), x.dtype),
        grid=grid,
        in_specs=[pl.BlockSpec((kk, tile_h, wout, tile_nc),
                               lambda i, j: (0, i, 0, j))],
        out_specs=pl.BlockSpec((tile_h, wout, tile_nc),
                               lambda i, j: (i, 0, j)),
        compiler_params=pltpu.CompilerParams(
            dimension_semantics=("parallel", "parallel")),
    )(xr)

    # Drop lane padding, back to NCHW.
    out = out[:, :, :nc]
    return jnp.transpose(out, (2, 0, 1)).reshape(n, c, hout, wout)


if __name__ == "__main__":
    key = jax.random.PRNGKey(0)

    def ref_maxpool(x, k=3):
        return lax.reduce_window(
            x, -jnp.inf, lax.max,
            window_dimensions=(1, 1, k, k),
            window_strides=(1, 1, k, k),
            padding="VALID",
        )

    # Toy shape from the PyTorch spec + a slightly larger one.
    for shape in [(1, 2, 6, 6), (2, 4, 18, 18)]:
        x = jax.random.uniform(key, shape, dtype=jnp.float32)
        y = jax.block_until_ready(maxpool2d(x, k=3))
        r = ref_maxpool(x, k=3)
        assert y.shape == r.shape, (y.shape, r.shape)
        assert jnp.allclose(y, r), f"mismatch vs reference for shape {shape}"

    print("KERNEL_OK")
</pallas_src>

<mosaic_0001>
module attributes {stable_mosaic.version = 11 : i64} {
  func.func @_maxpool_kernel(%arg0: i32, %arg1: i32, %arg2: memref<9x2x2x128xf32, #tpu.memory_space<vmem>>, %arg3: memref<2x2x128xf32, #tpu.memory_space<vmem>>) attributes {dimension_semantics = [#tpu.dimension_semantics<parallel>, #tpu.dimension_semantics<parallel>], iteration_bounds = array<i64: 1, 1>, scalar_prefetch = 0 : i64, scratch_operands = 0 : i64, tpu.core_type = #tpu.core_type<tc>, window_params = [{transform_indices = @transform_0, window_bounds = array<i64: 9, 2, 2, 128>}, {transform_indices = @transform_1, window_bounds = array<i64: 2, 2, 128>}]} {
    %c0 = arith.constant 0 : index
    %c0_0 = arith.constant 0 : index
    %c0_1 = arith.constant 0 : index
    %c0_2 = arith.constant 0 : index
    %0 = vector.load %arg2[%c0, %c0_0, %c0_1, %c0_2] : memref<9x2x2x128xf32, #tpu.memory_space<vmem>>, vector<1x2x2x128xf32>
    %1 = vector.shape_cast %0 : vector<1x2x2x128xf32> to vector<2x2x128xf32>
    %c1 = arith.constant 1 : index
    %c0_3 = arith.constant 0 : index
    %c0_4 = arith.constant 0 : index
    %c0_5 = arith.constant 0 : index
    %2 = vector.load %arg2[%c1, %c0_3, %c0_4, %c0_5] : memref<9x2x2x128xf32, #tpu.memory_space<vmem>>, vector<1x2x2x128xf32>
    %3 = vector.shape_cast %2 : vector<1x2x2x128xf32> to vector<2x2x128xf32>
    %4 = arith.maximumf %1, %3 : vector<2x2x128xf32>
    %c2 = arith.constant 2 : index
    %c0_6 = arith.constant 0 : index
    %c0_7 = arith.constant 0 : index
    %c0_8 = arith.constant 0 : index
    %5 = vector.load %arg2[%c2, %c0_6, %c0_7, %c0_8] : memref<9x2x2x128xf32, #tpu.memory_space<vmem>>, vector<1x2x2x128xf32>
    %6 = vector.shape_cast %5 : vector<1x2x2x128xf32> to vector<2x2x128xf32>
    %7 = arith.maximumf %4, %6 : vector<2x2x128xf32>
    %c3 = arith.constant 3 : index
    %c0_9 = arith.constant 0 : index
    %c0_10 = arith.constant 0 : index
    %c0_11 = arith.constant 0 : index
    %8 = vector.load %arg2[%c3, %c0_9, %c0_10, %c0_11] : memref<9x2x2x128xf32, #tpu.memory_space<vmem>>, vector<1x2x2x128xf32>
    %9 = vector.shape_cast %8 : vector<1x2x2x128xf32> to vector<2x2x128xf32>
    %10 = arith.maximumf %7, %9 : vector<2x2x128xf32>
    %c4 = arith.constant 4 : index
    %c0_12 = arith.constant 0 : index
    %c0_13 = arith.constant 0 : index
    %c0_14 = arith.constant 0 : index
    %11 = vector.load %arg2[%c4, %c0_12, %c0_13, %c0_14] : memref<9x2x2x128xf32, #tpu.memory_space<vmem>>, vector<1x2x2x128xf32>
    %12 = vector.shape_cast %11 : vector<1x2x2x128xf32> to vector<2x2x128xf32>
    %13 = arith.maximumf %10, %12 : vector<2x2x128xf32>
    %c5 = arith.constant 5 : index
    %c0_15 = arith.constant 0 : index
    %c0_16 = arith.constant 0 : index
    %c0_17 = arith.constant 0 : index
    %14 = vector.load %arg2[%c5, %c0_15, %c0_16, %c0_17] : memref<9x2x2x128xf32, #tpu.memory_space<vmem>>, vector<1x2x2x128xf32>
    %15 = vector.shape_cast %14 : vector<1x2x2x128xf32> to vector<2x2x128xf32>
    %16 = arith.maximumf %13, %15 : vector<2x2x128xf32>
    %c6 = arith.constant 6 : index
    %c0_18 = arith.constant 0 : index
    %c0_19 = arith.constant 0 : index
    %c0_20 = arith.constant 0 : index
    %17 = vector.load %arg2[%c6, %c0_18, %c0_19, %c0_20] : memref<9x2x2x128xf32, #tpu.memory_space<vmem>>, vector<1x2x2x128xf32>
    %18 = vector.shape_cast %17 : vector<1x2x2x128xf32> to vector<2x2x128xf32>
    %19 = arith.maximumf %16, %18 : vector<2x2x128xf32>
    %c7 = arith.constant 7 : index
    %c0_21 = arith.constant 0 : index
    %c0_22 = arith.constant 0 : index
    %c0_23 = arith.constant 0 : index
    %20 = vector.load %arg2[%c7, %c0_21, %c0_22, %c0_23] : memref<9x2x2x128xf32, #tpu.memory_space<vmem>>, vector<1x2x2x128xf32>
    %21 = vector.shape_cast %20 : vector<1x2x2x128xf32> to vector<2x2x128xf32>
    %22 = arith.maximumf %19, %21 : vector<2x2x128xf32>
    %c8 = arith.constant 8 : index
    %c0_24 = arith.constant 0 : index
    %c0_25 = arith.constant 0 : index
    %c0_26 = arith.constant 0 : index
    %23 = vector.load %arg2[%c8, %c0_24, %c0_25, %c0_26] : memref<9x2x2x128xf32, #tpu.memory_space<vmem>>, vector<1x2x2x128xf32>
    %24 = vector.shape_cast %23 : vector<1x2x2x128xf32> to vector<2x2x128xf32>
    %25 = arith.maximumf %22, %24 : vector<2x2x128xf32>
    %c0_27 = arith.constant 0 : index
    %c0_28 = arith.constant 0 : index
    %c0_29 = arith.constant 0 : index
    %26 = vector.load %arg3[%c0_27, %c0_28, %c0_29] : memref<2x2x128xf32, #tpu.memory_space<vmem>>, vector<2x2x128xf32>
    tpu.vector_store %arg3[%c0_27, %c0_28, %c0_29], %25 {strides = array<i32>} : memref<2x2x128xf32, #tpu.memory_space<vmem>>, vector<2x2x128xf32>,
    return
  }
  func.func @transform_0(%arg0: i32, %arg1: i32) -> (i32, i32, i32, i32) {
    %c0_i32 = arith.constant 0 : i32
    %c0_i32_0 = arith.constant 0 : i32
    %c0_i32_1 = arith.constant 0 : i32
    return %c0_i32, %arg0, %c0_i32_0, %arg1 : i32, i32, i32, i32
  }
  func.func @transform_1(%arg0: i32, %arg1: i32) -> (i32, i32, i32) {
    %c0_i32 = arith.constant 0 : i32
    %c0_i32_0 = arith.constant 0 : i32
    return %arg0, %c0_i32, %arg1 : i32, i32, i32
  }
}

</mosaic_0001>

<llo_original>
// kernel: tpu_custom_call.1
$region0: #{tpu_custom_call.1}
  #allocation0 [shape = 'u32[]', space=smem, size = 0x4, offset = 0x4, fixed_abs, tag = 'smem constant byte address 0x4 - core index']
  #allocation1 [shape = 'u32[144,128]{1,0:T(1,128)}', space=vmem, size = 0x12000, scoped, tag = 'internal scratch']
  %s0 = inlined_call_operand.hbm [shape: f32[9,2,2,128], index: 0, kind: input, shape index: {}]
  %s1 = inlined_call_operand.hbm [shape: f32[2,2,128], index: 1, kind: output, shape index: {}]
  %s2 = sld [smem:[#allocation0]]
  $region18: #{tpu_custom_call.1} parent=0
    _
  %s4 = ssub.s32 1, %s2
  %s5 = scalar_select 0, %s4, %s2
  $region1: #{tpu_custom_call.1} parent=0
    #allocation2 [shape = 'u8[18432]{0}', space=vmem, size = 0x4800, scoped, tag = 'input window, operand 0, single buffered']
    #allocation3 [shape = 's32[1]{0}', space=sflag, size = 0x4, scoped, tag = 'scoped memory for tpu_custom_call.1']
    #allocation4 [shape = 's32[1]{0}', space=sflag, size = 0x4, scoped, tag = 'scoped memory for tpu_custom_call.1']
    #allocation5 [shape = 'u8[2048]{0}', space=vmem, size = 0x800, scoped, tag = 'output window, operand 0, single buffered']
    %6 = vsyncpa [#allocation3], 0
    %7 = vsyncpa [#allocation4], 0
    // Predicated region
    $region2: #{tpu_custom_call.1} parent=1 // pred_check
      _
    $region3: #{tpu_custom_call.1} parent=1 // pred_check_branch
      %9 = sbr.rel (0) target = $region5
    $region4: #{tpu_custom_call.1} parent=1 // pred_region
      %s11 = ssub.s32 576, 576
      %12 = vsyncadd [#allocation3], %s11
      %s13 = sshll.u32 [#allocation2], 4
      %s14 = int_to_ptr.vmem [resolvable:$true] %s13
      %19 = dma.hbm_to_vmem [thread:$0]  %s0, 576, %s14, [#allocation3], 32, 32, 2
    $region5: #{tpu_custom_call.1} parent=1 // pred_fallthru
      _
    // Predicated region
    $region6: #{tpu_custom_call.1} parent=1 // pred_check
      _
    $region7: #{tpu_custom_call.1} parent=1 // pred_check_branch
      %21 = sbr.rel (0) target = $region9
    $region8: #{tpu_custom_call.1} parent=1 // pred_region
      %22 = dma.done [#allocation3], 576
    $region9: #{tpu_custom_call.1} parent=1 // pred_fallthru
      _
    %v23 = vld [vmem:[#allocation2] sm:$0x3]
    %v24 = vld [vmem:[#allocation2 + $0x2] sm:$0x3]
    %s25 = scalar_lea.vmem [#allocation2], 4
    %v26 = vld [vmem:[%s25] sm:$0x3]
    %v27 = vld [vmem:[%s25 + $0x2] sm:$0x3]
    %v28 = vmax.f32 %v23, %v26
    %v29 = vmax.f32 %v24, %v27
    %s30 = scalar_lea.vmem [#allocation2], 8
    %v31 = vld [vmem:[%s30] sm:$0x3]
    %v32 = vld [vmem:[%s30 + $0x2] sm:$0x3]
    %v33 = vmax.f32 %v28, %v31
    %v34 = vmax.f32 %v29, %v32
    %s35 = scalar_lea.vmem [#allocation2], 12
    %v36 = vld [vmem:[%s35] sm:$0x3]
    %v37 = vld [vmem:[%s35 + $0x2] sm:$0x3]
    %v38 = vmax.f32 %v33, %v36
    %v39 = vmax.f32 %v34, %v37
    %s40 = scalar_lea.vmem [#allocation2], 16
    %v41 = vld [vmem:[%s40] sm:$0x3]
    %v42 = vld [vmem:[%s40 + $0x2] sm:$0x3]
    %v43 = vmax.f32 %v38, %v41
    %v44 = vmax.f32 %v39, %v42
    %s45 = scalar_lea.vmem [#allocation2], 20
    %v46 = vld [vmem:[%s45] sm:$0x3]
    %v47 = vld [vmem:[%s45 + $0x2] sm:$0x3]
    %v48 = vmax.f32 %v43, %v46
    %v49 = vmax.f32 %v44, %v47
    %s50 = scalar_lea.vmem [#allocation2], 24
    %v51 = vld [vmem:[%s50] sm:$0x3]
    %v52 = vld [vmem:[%s50 + $0x2] sm:$0x3]
    %v53 = vmax.f32 %v48, %v51
    %v54 = vmax.f32 %v49, %v52
    %s55 = scalar_lea.vmem [#allocation2], 28
    %v56 = vld [vmem:[%s55] sm:$0x3]
    %v57 = vld [vmem:[%s55 + $0x2] sm:$0x3]
    %v58 = vmax.f32 %v53, %v56
    %v59 = vmax.f32 %v54, %v57
    %s60 = scalar_lea.vmem [#allocation2], 32
    %v61 = vld [vmem:[%s60] sm:$0x3]
    %v62 = vld [vmem:[%s60 + $0x2] sm:$0x3]
    %v63 = vmax.f32 %v58, %v61
    %v64 = vmax.f32 %v59, %v62
    %65 = vst [vmem:[#allocation5] sm:$0x3] %v63
    %66 = vst [vmem:[#allocation5 + $0x2] sm:$0x3] %v64
    // Predicated region
    $region10: #{tpu_custom_call.1} parent=1 // pred_check
      _
    $region11: #{tpu_custom_call.1} parent=1 // pred_check_branch
      %68 = sbr.rel (0) target = $region13
    $region12: #{tpu_custom_call.1} parent=1 // pred_region
      %s70 = ssub.s32 64, 64
      %71 = vsyncadd [#allocation4], %s70
      %s72 = sshll.u32 [#allocation5], 4
      %s73 = int_to_ptr.vmem [resolvable:$true] %s72
      %78 = dma.vmem_to_hbm [thread:$0]  %s73, 64, %s1, [#allocation4], 32, 32, 2
    $region13: #{tpu_custom_call.1} parent=1 // pred_fallthru
      _
    // Predicated region
    $region14: #{tpu_custom_call.1} parent=1 // pred_check
      _
    $region15: #{tpu_custom_call.1} parent=1 // pred_check_branch
      %80 = sbr.rel (0) target = $region17
    $region16: #{tpu_custom_call.1} parent=1 // pred_region
      %81 = dma.done [#allocation4], 64
    $region17: #{tpu_custom_call.1} parent=1 // pred_fallthru
      _
    %82 = vsyncpa [#allocation3], 1
    %83 = vsyncpa [#allocation4], 1

</llo_original>
